<compile_context>
chip_gen: v6e
topology: v6e:2x2x1
jax: 0.10.0
libtpu: 0.0.40
codegen_flags: <defaults>
</compile_context>

<pallas_src>
import functools

import jax
import jax.numpy as jnp
from jax.experimental import pallas as pl
from jax.experimental.pallas import tpu as pltpu


# ---------------------------------------------------------------------------
# Kernels
# ---------------------------------------------------------------------------

def _normalize_rows(z, eps):
    """(z - mean) / (unbiased std + eps), computed in f32. z: (rows, d_hid)."""
    zf = z.astype(jnp.float32)
    d = zf.shape[-1]
    mu = jnp.mean(zf, axis=-1, keepdims=True)
    diff = zf - mu
    # torch.std default is the unbiased estimator (divide by d - 1).
    var = jnp.sum(diff * diff, axis=-1, keepdims=True) * (1.0 / jnp.float32(d - 1))
    sigma = jnp.sqrt(var)
    # Per-row reciprocal (rows, 1) instead of a full-tile (rows, d_hid) divide.
    inv = pl.reciprocal(sigma + jnp.float32(eps), approx=False)
    return diff * inv


def _ln_affine_kernel(z_ref, a_ref, b_ref, o_ref, *, eps):
    out = _normalize_rows(z_ref[...], eps)
    out = out * a_ref[...].astype(jnp.float32) + b_ref[...].astype(jnp.float32)
    o_ref[...] = out.astype(o_ref.dtype)


def _ln_plain_kernel(z_ref, o_ref, *, eps):
    o_ref[...] = _normalize_rows(z_ref[...], eps).astype(o_ref.dtype)


# ---------------------------------------------------------------------------
# Wrapper
# ---------------------------------------------------------------------------

_VMEM_LIMIT_CAP = 48 * 1024 * 1024  # safe on every generation (v7x phys = 64 MiB)


def _vmem_limit_bytes():
    """Scoped VMEM limit, budgeted against the actual chip's VMEM capacity."""
    try:
        cap = int(pltpu.get_tpu_info().vmem_capacity_bytes)
    except Exception:  # conservative default: v7x per-TensorCore capacity
        cap = 64 * 1024 * 1024
    # Leave headroom for compiler-internal scratch.
    return min(_VMEM_LIMIT_CAP, (cap * 5) // 8)


def _pick_tile_rows(n_rows, d_hid, in_itemsize, out_itemsize, vmem_limit):
    """Largest multiple-of-8 row tile whose pipelined buffers fit the budget."""
    if n_rows <= 8:
        return n_rows  # block equals the full row dim (allowed by the tiling rule)
    # Per grid step: double-buffered input + output tiles, plus ~3 f32-sized
    # intermediates the compiler may keep in VMEM while computing in f32.
    bytes_per_row = d_hid * (2 * in_itemsize + 2 * out_itemsize + 3 * 4)
    budget = max(vmem_limit // 2, bytes_per_row)  # keep well under scoped limit
    tile = budget // bytes_per_row
    tile = max(8, min(int(tile), 2048))
    tile = (tile // 8) * 8
    # Never larger than the 8-aligned row count (trailing partial block is
    # handled by the pipeline via pl.cdiv grid + masked writes).
    max_full = (n_rows // 8) * 8
    return max(8, min(tile, max_full))


def layer_normalization(z, a_2=None, b_2=None, eps=0.001, affine=True):
    """Pallas LayerNormalization forward. z: (..., d_hid)."""
    d_hid = z.shape[-1]
    if d_hid == 1:
        # Module returns the input unchanged when the last dim is 1.
        return z

    orig_shape = z.shape
    z2 = z.reshape(-1, d_hid)  # (N, d_hid); d_hid is the lane/reduction axis
    n_rows = z2.shape[0]

    vmem_limit = _vmem_limit_bytes()
    out_dtype = z.dtype
    tile_rows = _pick_tile_rows(
        n_rows, d_hid, z2.dtype.itemsize, jnp.dtype(out_dtype).itemsize, vmem_limit
    )
    grid = (pl.cdiv(n_rows, tile_rows),)

    # TODO(synk): for small d_hid that is not a multiple of 128 the output
    # stores are masked (vst.msk); a lane-packing restructure of the wrapper
    # would be needed for fully lane-dense stores.
    z_spec = pl.BlockSpec((tile_rows, d_hid), lambda i: (i, 0))
    o_spec = pl.BlockSpec((tile_rows, d_hid), lambda i: (i, 0))

    compiler_params = pltpu.CompilerParams(
        dimension_semantics=("parallel",),
        vmem_limit_bytes=vmem_limit,
    )

    if affine:
        a2 = a_2.reshape(1, d_hid)
        b2 = b_2.reshape(1, d_hid)
        kernel = functools.partial(_ln_affine_kernel, eps=eps)
        in_specs = [
            z_spec,
            pl.BlockSpec((1, d_hid), lambda i: (0, 0)),
            pl.BlockSpec((1, d_hid), lambda i: (0, 0)),
        ]
        args = (z2, a2, b2)
    else:
        # Non-affine path: no a/b inputs at all (saves 2 full-tile VPU ops
        # and 2 small DMAs per grid step).
        kernel = functools.partial(_ln_plain_kernel, eps=eps)
        in_specs = [z_spec]
        args = (z2,)

    out2 = pl.pallas_call(
        kernel,
        out_shape=jax.ShapeDtypeStruct((n_rows, d_hid), out_dtype),
        grid_spec=pltpu.PrefetchScalarGridSpec(
            num_scalar_prefetch=0,
            grid=grid,
            in_specs=in_specs,
            out_specs=o_spec,
        ),
        compiler_params=compiler_params,
    )(*args)

    return out2.reshape(orig_shape)


# ---------------------------------------------------------------------------
# Reference + demo
# ---------------------------------------------------------------------------

def _reference(z, a_2=None, b_2=None, eps=0.001, affine=True):
    if z.shape[-1] == 1:
        return z
    z32 = z.astype(jnp.float32)
    mu = jnp.mean(z32, axis=-1, keepdims=True)
    sigma = jnp.sqrt(
        jnp.sum((z32 - mu) ** 2, axis=-1, keepdims=True) / (z.shape[-1] - 1)
    )
    out = (z32 - mu) / (sigma + eps)
    if affine:
        out = out * a_2 + b_2
    return out.astype(z.dtype)


if __name__ == "__main__":
    eps = 0.001
    key = jax.random.PRNGKey(0)
    k1, k2 = jax.random.split(key)

    # --- affine path: (batch=2, seq=8, d_hid=32) ---------------------------
    batch, seq, d_hid = 2, 8, 32
    z = jax.random.normal(k1, (batch, seq, d_hid), dtype=jnp.float32)
    a_2 = jnp.ones((d_hid,), jnp.float32)   # matches nn.Parameter(torch.ones)
    b_2 = jnp.zeros((d_hid,), jnp.float32)  # matches nn.Parameter(torch.zeros)

    out = layer_normalization(z, a_2, b_2, eps=eps, affine=True)
    out = jax.block_until_ready(out)
    ref = _reference(z, a_2, b_2, eps=eps, affine=True)
    assert out.shape == z.shape and out.dtype == z.dtype
    assert jnp.allclose(out, ref, atol=1e-5, rtol=1e-5)

    # --- non-affine path, row count not a multiple of the tile -------------
    z2 = jax.random.normal(k2, (3, 5, d_hid), dtype=jnp.float32)  # 15 rows
    out2 = layer_normalization(z2, eps=eps, affine=False)
    out2 = jax.block_until_ready(out2)
    ref2 = _reference(z2, eps=eps, affine=False)
    assert out2.shape == z2.shape and out2.dtype == z2.dtype
    assert jnp.allclose(out2, ref2, atol=1e-5, rtol=1e-5)

    print("KERNEL_OK")
</pallas_src>

<mosaic_0001>
module attributes {stable_mosaic.version = 11 : i64} {
  func.func @_ln_affine_kernel(%arg0: i32, %arg1: memref<16x32xf32, #tpu.memory_space<vmem>>, %arg2: memref<1x32xf32, #tpu.memory_space<vmem>>, %arg3: memref<1x32xf32, #tpu.memory_space<vmem>>, %arg4: memref<16x32xf32, #tpu.memory_space<vmem>>) attributes {dimension_semantics = [#tpu.dimension_semantics<parallel>], iteration_bounds = array<i64: 1>, scalar_prefetch = 0 : i64, scratch_operands = 0 : i64, tpu.core_type = #tpu.core_type<tc>, window_params = [{transform_indices = @transform_0, window_bounds = array<i64: 16, 32>}, {pipeline_mode = #tpu.pipeline_mode<synchronous>, transform_indices = @transform_1, window_bounds = array<i64: 1, 32>}, {pipeline_mode = #tpu.pipeline_mode<synchronous>, transform_indices = @transform_2, window_bounds = array<i64: 1, 32>}, {transform_indices = @transform_3, window_bounds = array<i64: 16, 32>}]} {
    %c0 = arith.constant 0 : index
    %c0_0 = arith.constant 0 : index
    %0 = vector.load %arg1[%c0, %c0_0] : memref<16x32xf32, #tpu.memory_space<vmem>>, vector<16x32xf32>
    %cst = arith.constant dense<0.000000e+00> : vector<16xf32>
    %1 = vector.multi_reduction <add>, %0, %cst [1] : vector<16x32xf32> to vector<16xf32>
    %2 = vector.shape_cast %1 : vector<16xf32> to vector<16x1xf32>
    %cst_1 = arith.constant 3.200000e+01 : f32
    %3 = vector.broadcast %cst_1 : f32 to vector<16x1xf32>
    %4 = arith.divf %2, %3 : vector<16x1xf32>
    %5 = vector.broadcast %4 : vector<16x1xf32> to vector<16x32xf32>
    %6 = arith.subf %0, %5 : vector<16x32xf32>
    %7 = arith.mulf %6, %6 : vector<16x32xf32>
    %cst_2 = arith.constant dense<0.000000e+00> : vector<16xf32>
    %8 = vector.multi_reduction <add>, %7, %cst_2 [1] : vector<16x32xf32> to vector<16xf32>
    %9 = vector.shape_cast %8 : vector<16xf32> to vector<16x1xf32>
    %cst_3 = arith.constant 1.000000e+00 : f32
    %cst_4 = arith.constant 3.100000e+01 : f32
    %10 = arith.divf %cst_3, %cst_4 : f32
    %11 = vector.broadcast %10 : f32 to vector<16x1xf32>
    %12 = arith.mulf %9, %11 : vector<16x1xf32>
    %13 = math.sqrt %12 : vector<16x1xf32>
    %cst_5 = arith.constant 1.000000e-03 : f32
    %14 = vector.broadcast %cst_5 : f32 to vector<16x1xf32>
    %15 = arith.addf %13, %14 : vector<16x1xf32>
    %16 = tpu.reciprocal %15 : vector<16x1xf32> -> vector<16x1xf32>
    %17 = vector.broadcast %16 : vector<16x1xf32> to vector<16x32xf32>
    %18 = arith.mulf %6, %17 : vector<16x32xf32>
    %c0_6 = arith.constant 0 : index
    %c0_7 = arith.constant 0 : index
    %19 = vector.load %arg2[%c0_6, %c0_7] : memref<1x32xf32, #tpu.memory_space<vmem>>, vector<1x32xf32>
    %20 = vector.broadcast %19 : vector<1x32xf32> to vector<16x32xf32>
    %21 = arith.mulf %18, %20 : vector<16x32xf32>
    %c0_8 = arith.constant 0 : index
    %c0_9 = arith.constant 0 : index
    %22 = vector.load %arg3[%c0_8, %c0_9] : memref<1x32xf32, #tpu.memory_space<vmem>>, vector<1x32xf32>
    %23 = vector.broadcast %22 : vector<1x32xf32> to vector<16x32xf32>
    %24 = arith.addf %21, %23 : vector<16x32xf32>
    %c0_10 = arith.constant 0 : index
    %c0_11 = arith.constant 0 : index
    %25 = vector.load %arg4[%c0_10, %c0_11] : memref<16x32xf32, #tpu.memory_space<vmem>>, vector<16x32xf32>
    tpu.vector_store %arg4[%c0_10, %c0_11], %24 {strides = array<i32>} : memref<16x32xf32, #tpu.memory_space<vmem>>, vector<16x32xf32>,
    return
  }
  func.func @transform_0(%arg0: i32) -> (i32, i32) {
    %c0_i32 = arith.constant 0 : i32
    %c0_i32_0 = arith.constant 0 : i32
    return %arg0, %c0_i32 : i32, i32
  }
  func.func @transform_1(%arg0: i32) -> (i32, i32) {
    %c0_i32 = arith.constant 0 : i32
    %c0_i32_0 = arith.constant 0 : i32
    %c0_i32_1 = arith.constant 0 : i32
    return %c0_i32, %c0_i32_0 : i32, i32
  }
  func.func @transform_2(%arg0: i32) -> (i32, i32) {
    %c0_i32 = arith.constant 0 : i32
    %c0_i32_0 = arith.constant 0 : i32
    %c0_i32_1 = arith.constant 0 : i32
    return %c0_i32, %c0_i32_0 : i32, i32
  }
  func.func @transform_3(%arg0: i32) -> (i32, i32) {
    %c0_i32 = arith.constant 0 : i32
    %c0_i32_0 = arith.constant 0 : i32
    return %arg0, %c0_i32 : i32, i32
  }
}

</mosaic_0001>

<llo_original>
// kernel: tpu_custom_call.1
$region0: #{tpu_custom_call.1}
  #allocation0 [shape = 'u32[]', space=smem, size = 0x4, offset = 0x4, fixed_abs, tag = 'smem constant byte address 0x4 - core index']
  #allocation1 [shape = 'u32[144,128]{1,0:T(1,128)}', space=vmem, size = 0x12000, scoped, tag = 'internal scratch']
  %s0 = inlined_call_operand.hbm [shape: f32[16,32], index: 0, kind: input, shape index: {}]
  %s1 = inlined_call_operand.vmem [shape: f32[1,32], index: 1, kind: input, shape index: {}]
  %s2 = inlined_call_operand.vmem [shape: f32[1,32], index: 2, kind: input, shape index: {}]
  %s3 = inlined_call_operand.hbm [shape: f32[16,32], index: 3, kind: output, shape index: {}]
  %s4 = sld [smem:[#allocation0]]
  $region26: #{tpu_custom_call.1} parent=0
    _
  %s6 = ssub.s32 1, %s4
  %s7 = scalar_select 0, %s6, %s4
  $region1: #{tpu_custom_call.1} parent=0
    #allocation2 [shape = 'u8[8192]{0}', space=vmem, size = 0x2000, scoped, tag = 'input window, operand 0, single buffered']
    #allocation3 [shape = 's32[1]{0}', space=sflag, size = 0x4, scoped, tag = 'scoped memory for tpu_custom_call.1']
    #allocation4 [shape = 's32[1]{0}', space=sflag, size = 0x4, scoped, tag = 'scoped memory for tpu_custom_call.1']
    #allocation5 [shape = 'u8[8192]{0}', space=vmem, size = 0x2000, scoped, tag = 'output window, operand 0, single buffered']
    %8 = vsyncpa [#allocation3], 0
    %9 = vsyncpa [#allocation4], 0
    // Predicated region
    $region2: #{tpu_custom_call.1} parent=1 // pred_check
      _
    $region3: #{tpu_custom_call.1} parent=1 // pred_check_branch
      %11 = sbr.rel (0) target = $region5
    $region4: #{tpu_custom_call.1} parent=1 // pred_region
      %s13 = ssub.s32 256, 256
      %14 = vsyncadd [#allocation3], %s13
      %s15 = sshll.u32 [#allocation2], 4
      %s16 = int_to_ptr.vmem [resolvable:$true] %s15
      %21 = dma.hbm_to_vmem [thread:$0]  %s0, 256, %s16, [#allocation3], 128, 128, 8
    $region5: #{tpu_custom_call.1} parent=1 // pred_fallthru
      _
    // Predicated region
    $region6: #{tpu_custom_call.1} parent=1 // pred_check
      _
    $region7: #{tpu_custom_call.1} parent=1 // pred_check_branch
      %23 = sbr.rel (0) target = $region9
    $region8: #{tpu_custom_call.1} parent=1 // pred_region
      _
    $region9: #{tpu_custom_call.1} parent=1 // pred_fallthru
      _
    // Predicated region
    $region10: #{tpu_custom_call.1} parent=1 // pred_check
      _
    $region11: #{tpu_custom_call.1} parent=1 // pred_check_branch
      %25 = sbr.rel (0) target = $region13
    $region12: #{tpu_custom_call.1} parent=1 // pred_region
      _
    $region13: #{tpu_custom_call.1} parent=1 // pred_fallthru
      _
    // Predicated region
    $region14: #{tpu_custom_call.1} parent=1 // pred_check
      _
    $region15: #{tpu_custom_call.1} parent=1 // pred_check_branch
      %27 = sbr.rel (0) target = $region17
    $region16: #{tpu_custom_call.1} parent=1 // pred_region
      %28 = dma.done [#allocation3], 256
    $region17: #{tpu_custom_call.1} parent=1 // pred_fallthru
      _
    %v29 = vld [vmem:[#allocation2] sm:$0xff]
    %v30 = vld [vmem:[#allocation2 + $0x8] sm:$0xff]
    %vm31 = vcmask 261120
    %v32 = vsel %vm31, %v29, 0.0
    %33 = vadd.xlane.f32.xlu0 %v32
    %v34 = vpop.xlane.xlu0 %33
    %v35 = vsel %vm31, %v30, 0.0
    %36 = vadd.xlane.f32.xlu0 %v35
    %v37 = vpop.xlane.xlu0 %36
    %v38 = vrcp.pop 32.0
    %v39 = vmul.f32 %v34, %v38
    %v40 = vmul.f32 %v37, %v38
    %v41 = vsub.f32 %v29, %v39
    %v42 = vsub.f32 %v30, %v40
    %v43 = vmul.f32 %v41, %v41
    %v44 = vmul.f32 %v42, %v42
    %v45 = vsel %vm31, %v43, 0.0
    %46 = vadd.xlane.f32.xlu0 %v45
    %v47 = vpop.xlane.xlu0 %46
    %v48 = vsel %vm31, %v44, 0.0
    %49 = vadd.xlane.f32.xlu0 %v48
    %v50 = vpop.xlane.xlu0 %49
    %v51 = vmul.f32 %v47, 0.032258064
    %v52 = vmul.f32 %v50, 0.032258064
    %v53 = vrsqrt.pop %v51
    %v54 = vmul.f32 %v51, %v53
    %vm55 = vcmp.eq.f32.partialorder %v51, inf
    %v56 = vsel %vm55, %v51, %v54
    %vm57 = vcmp.eq.f32.partialorder %v51, 0.0
    %v58 = vand.u32 %v51, 2147483648
    %v59 = vsel %vm57, %v58, %v56
    %v60 = vrsqrt.pop %v52
    %v61 = vmul.f32 %v52, %v60
    %vm62 = vcmp.eq.f32.partialorder %v52, inf
    %v63 = vsel %vm62, %v52, %v61
    %vm64 = vcmp.eq.f32.partialorder %v52, 0.0
    %v65 = vand.u32 %v52, 2147483648
    %v66 = vsel %vm64, %v65, %v63
    %v67 = vadd.f32 %v59, 0.001
    %v68 = vadd.f32 %v66, 0.001
    %v69 = vrcp.pop %v67
    %v70 = vrcp.pop %v68
    %v71 = vmul.f32 %v41, %v69
    %v72 = vmul.f32 %v42, %v70
    %v73 = vld [vmem:[%s1] sm:$0x1]
    %v75 = vlaneseq
    %v76 = vshrl.u32 %v75, 7
    %v77 = vsub.s32 0, %v76
    %v78 = vrot.slane %v73, %v77
    %v80 = vmul.f32 %v71, %v78
    %v81 = vmul.f32 %v72, %v78
    %v82 = vld [vmem:[%s2] sm:$0x1]
    %v84 = vlaneseq
    %v85 = vshrl.u32 %v84, 7
    %v86 = vsub.s32 0, %v85
    %v87 = vrot.slane %v82, %v86
    %v89 = vadd.f32 %v80, %v87
    %v90 = vadd.f32 %v81, %v87
    %91 = vst.msk [vmem:[#allocation5] sm:$0xff] %vm31, %v89
    %92 = vst.msk [vmem:[#allocation5 + $0x8] sm:$0xff] %vm31, %v90
    // Predicated region
    $region18: #{tpu_custom_call.1} parent=1 // pred_check
      _
    $region19: #{tpu_custom_call.1} parent=1 // pred_check_branch
      %94 = sbr.rel (0) target = $region21
    $region20: #{tpu_custom_call.1} parent=1 // pred_region
      %s96 = ssub.s32 256, 256
      %97 = vsyncadd [#allocation4], %s96
      %s98 = sshll.u32 [#allocation5], 4
      %s99 = int_to_ptr.vmem [resolvable:$true] %s98
      %104 = dma.vmem_to_hbm [thread:$0]  %s99, 256, %s3, [#allocation4], 128, 128, 8
    $region21: #{tpu_custom_call.1} parent=1 // pred_fallthru
      _
    // Predicated region
    $region22: #{tpu_custom_call.1} parent=1 // pred_check
      _
    $region23: #{tpu_custom_call.1} parent=1 // pred_check_branch
      %106 = sbr.rel (0) target = $region25
    $region24: #{tpu_custom_call.1} parent=1 // pred_region
      %107 = dma.done [#allocation4], 256
    $region25: #{tpu_custom_call.1} parent=1 // pred_fallthru
      _
    %108 = vsyncpa [#allocation3], 1
    %109 = vsyncpa [#allocation4], 1

</llo_original>
